<compile_context>
chip_gen: v6e
topology: v6e:2x2x1
jax: 0.10.0
libtpu: 0.0.40
codegen_flags: <defaults>
</compile_context>

<pallas_src>
import functools
import math

import jax
import jax.numpy as jnp
from jax import lax
from jax.experimental import pallas as pl
from jax.experimental.pallas import tpu as pltpu


# 48 MiB: > scoped defaults (16 MiB v5e / 32 MiB v6e,v7x), < 64 MiB v7x physical.
_VMEM_LIMIT_BYTES = 48 * 1024 * 1024


def _pick_tile(dim: int, target: int, align: int) -> int:
    """Largest divisor of `dim` that is <= target and a multiple of `align`.

    Falls back to the full extent (always a legal Pallas block size) so we never
    emit an unaligned partial block and never silently drop pipelining for
    shapes that do have an aligned divisor.
    """
    t = min(target, dim)
    c = (t // align) * align
    while c >= align:
        if dim % c == 0:
            return c
        c -= align
    return dim


# ----------------------------------------------------------------------------
# Linear layer:  y = x @ W + b
# ----------------------------------------------------------------------------
def _linear_kernel(x_ref, w_ref, b_ref, o_ref):
    x = x_ref[...].astype(jnp.float32)
    w = w_ref[...].astype(jnp.float32)
    b = b_ref[...].astype(jnp.float32)
    y = jnp.dot(x, w,
                preferred_element_type=jnp.float32,
                precision=lax.Precision.HIGHEST) + b
    o_ref[...] = y.astype(o_ref.dtype)


def linear(x2, w, b, *, row_tile_target=256, col_tile_target=512):
    """x2: (R, Din), w: (Din, Dout), b: (Dout,) -> (R, Dout)."""
    R, Din = x2.shape
    Dout = w.shape[1]
    tr = _pick_tile(R, row_tile_target, 8)       # sublane-aligned row tile
    tn = _pick_tile(Dout, col_tile_target, 128)  # lane-dense output columns
    grid = (R // tr, Dout // tn)

    return pl.pallas_call(
        _linear_kernel,
        out_shape=jax.ShapeDtypeStruct((R, Dout), x2.dtype),
        grid_spec=pltpu.PrefetchScalarGridSpec(
            num_scalar_prefetch=0,
            grid=grid,
            in_specs=[
                pl.BlockSpec((tr, Din), lambda i, j: (i, 0)),
                pl.BlockSpec((Din, tn), lambda i, j: (0, j)),
                pl.BlockSpec((1, tn), lambda i, j: (0, j)),
            ],
            out_specs=pl.BlockSpec((tr, tn), lambda i, j: (i, j)),
        ),
        compiler_params=pltpu.CompilerParams(
            dimension_semantics=("parallel", "parallel"),
            vmem_limit_bytes=_VMEM_LIMIT_BYTES,
        ),
    )(x2, w, b.reshape(1, Dout))


# ----------------------------------------------------------------------------
# Sparse attention core (one batch*head slice per grid step)
# ----------------------------------------------------------------------------
def _sparse_attn_kernel(q_ref, k_ref, v_ref, o_ref, *, scale, inv_temp, thresh):
    q = q_ref[0].astype(jnp.float32)   # (Sq, dk)
    k = k_ref[0].astype(jnp.float32)   # (Sk, dk)
    v = v_ref[0].astype(jnp.float32)   # (Sk, dk)

    # scores = q @ k^T / sqrt(d_k)
    scores = lax.dot_general(
        q, k, (((1,), (1,)), ((), ())),
        preferred_element_type=jnp.float32,
        precision=lax.Precision.HIGHEST) * scale        # (Sq, Sk)

    # pass 1: temperature-sharpened softmax, used only to build the sparsity mask
    s1 = scores * inv_temp
    m1 = jnp.max(s1, axis=-1, keepdims=True)
    p1 = jnp.exp(s1 - m1)
    a1 = p1 / jnp.sum(p1, axis=-1, keepdims=True)
    # NOTE: exact division (not pl.reciprocal(approx=True)) — the result feeds a
    # hard threshold compare, so approximate reciprocal could flip mask bits.

    # sparsify: entries whose sharpened attention is below 0.019 are dropped
    masked = jnp.where(a1 < thresh, jnp.float32(-1e9), scores)

    # pass 2: plain softmax over the surviving entries
    m2 = jnp.max(masked, axis=-1, keepdims=True)
    p2 = jnp.exp(masked - m2)
    a2 = p2 / jnp.sum(p2, axis=-1, keepdims=True)

    out = jnp.dot(a2, v,
                  preferred_element_type=jnp.float32,
                  precision=lax.Precision.HIGHEST)       # (Sq, dk)
    o_ref[0] = out.astype(o_ref.dtype)


def sparse_attention(qh, kh, vh, *, temp=0.01, thresh=0.019):
    """qh: (BH, Sq, dk), kh/vh: (BH, Sk, dk) -> (BH, Sq, dk)."""
    BH, Sq, dk = qh.shape
    Sk = kh.shape[1]
    kernel = functools.partial(
        _sparse_attn_kernel,
        scale=1.0 / math.sqrt(dk),
        inv_temp=1.0 / temp,
        thresh=thresh,
    )
    return pl.pallas_call(
        kernel,
        out_shape=jax.ShapeDtypeStruct((BH, Sq, dk), qh.dtype),
        grid_spec=pltpu.PrefetchScalarGridSpec(
            num_scalar_prefetch=0,
            grid=(BH,),
            in_specs=[
                pl.BlockSpec((1, Sq, dk), lambda i: (i, 0, 0)),
                pl.BlockSpec((1, Sk, dk), lambda i: (i, 0, 0)),
                pl.BlockSpec((1, Sk, dk), lambda i: (i, 0, 0)),
            ],
            out_specs=pl.BlockSpec((1, Sq, dk), lambda i: (i, 0, 0)),
        ),
        compiler_params=pltpu.CompilerParams(
            dimension_semantics=("parallel",),   # shards batch*heads across TCs on v7x
            vmem_limit_bytes=_VMEM_LIMIT_BYTES,
        ),
    )(qh, kh, vh)


# ----------------------------------------------------------------------------
# Full module forward
# ----------------------------------------------------------------------------
def sparse_de_mhatt(q, k, v, params, num_heads):
    """q: (B, Sq, D), k/v: (B, Sk, D). Weights stored as (Din, Dout)."""
    B, Sq, D = q.shape
    Sk = k.shape[1]
    assert D % num_heads == 0
    d_k = D // num_heads

    def proj(x, w, b):
        Bx, Sx, _ = x.shape
        y = linear(x.reshape(Bx * Sx, D), w, b)
        return y.reshape(Bx, Sx, D)

    qp = proj(q, params["wq"], params["bq"])
    kp = proj(k, params["wk"], params["bk"])
    vp = proj(v, params["wv"], params["bv"])

    def to_heads(x, S):
        # (B, S, D) -> (B, S, H, dk) -> (B, H, S, dk) -> (B*H, S, dk)
        return (x.reshape(B, S, num_heads, d_k)
                 .transpose(0, 2, 1, 3)
                 .reshape(B * num_heads, S, d_k))

    qh = to_heads(qp, Sq)
    kh = to_heads(kp, Sk)
    vh = to_heads(vp, Sk)

    att = sparse_attention(qh, kh, vh)                       # (B*H, Sq, dk)
    att = (att.reshape(B, num_heads, Sq, d_k)
              .transpose(0, 2, 1, 3)
              .reshape(B, Sq, D))

    out = linear(att.reshape(B * Sq, D), params["wm"], params["bm"])
    return out.reshape(B, Sq, D)


# ----------------------------------------------------------------------------
# Test / reference
# ----------------------------------------------------------------------------
def _reference(q, k, v, params, num_heads):
    B, Sq, D = q.shape
    Sk = k.shape[1]
    d_k = D // num_heads
    hp = lax.Precision.HIGHEST

    def lin(x, w, b):
        return jnp.einsum("bsd,de->bse", x, w, precision=hp) + b

    def heads(x, S):
        return x.reshape(B, S, num_heads, d_k).transpose(0, 2, 1, 3)

    qp = heads(lin(q, params["wq"], params["bq"]), Sq)
    kp = heads(lin(k, params["wk"], params["bk"]), Sk)
    vp = heads(lin(v, params["wv"], params["bv"]), Sk)

    scores = jnp.einsum("bhqd,bhkd->bhqk", qp, kp, precision=hp) / math.sqrt(d_k)
    att1 = jax.nn.softmax(scores / 0.01, axis=-1)
    masked = jnp.where(att1 < 0.019, jnp.float32(-1e9), scores)
    att2 = jax.nn.softmax(masked, axis=-1)
    out = jnp.einsum("bhqk,bhkd->bhqd", att2, vp, precision=hp)
    out = out.transpose(0, 2, 1, 3).reshape(B, Sq, D)
    return lin(out, params["wm"], params["bm"])


if __name__ == "__main__":
    B, S, D, H = 2, 8, 32, 4

    key = jax.random.PRNGKey(0)
    ks = jax.random.split(key, 11)

    def xavier(kk, din, dout):
        lim = math.sqrt(6.0 / (din + dout))
        return jax.random.uniform(kk, (din, dout), jnp.float32, -lim, lim)

    q = jax.random.normal(ks[0], (B, S, D), dtype=jnp.float32)
    k = jax.random.normal(ks[1], (B, S, D), dtype=jnp.float32)
    v = jax.random.normal(ks[2], (B, S, D), dtype=jnp.float32)

    params = {
        "wq": xavier(ks[3], D, D), "bq": 0.02 * jax.random.normal(ks[4], (D,)),
        "wk": xavier(ks[5], D, D), "bk": 0.02 * jax.random.normal(ks[6], (D,)),
        "wv": xavier(ks[7], D, D), "bv": 0.02 * jax.random.normal(ks[8], (D,)),
        "wm": xavier(ks[9], D, D), "bm": 0.02 * jax.random.normal(ks[10], (D,)),
    }

    y = sparse_de_mhatt(q, k, v, params, H)
    jax.block_until_ready(y)

    ref = _reference(q, k, v, params, H)
    assert y.shape == ref.shape, f"shape mismatch {y.shape} vs {ref.shape}"
    assert jnp.allclose(y, ref, atol=1e-4, rtol=1e-4), (
        f"mismatch vs reference, max abs diff = {float(jnp.max(jnp.abs(y - ref)))}"
    )

    print("KERNEL_OK")
</pallas_src>

<mosaic_0001>
module attributes {stable_mosaic.version = 11 : i64} {
  func.func @_linear_kernel(%arg0: i32, %arg1: i32, %arg2: memref<16x32xf32, #tpu.memory_space<vmem>>, %arg3: memref<32x32xf32, #tpu.memory_space<vmem>>, %arg4: memref<1x32xf32, #tpu.memory_space<vmem>>, %arg5: memref<16x32xf32, #tpu.memory_space<vmem>>) attributes {dimension_semantics = [#tpu.dimension_semantics<parallel>, #tpu.dimension_semantics<parallel>], iteration_bounds = array<i64: 1, 1>, scalar_prefetch = 0 : i64, scratch_operands = 0 : i64, tpu.core_type = #tpu.core_type<tc>, window_params = [{transform_indices = @transform_0, window_bounds = array<i64: 16, 32>}, {transform_indices = @transform_1, window_bounds = array<i64: 32, 32>}, {transform_indices = @transform_2, window_bounds = array<i64: 1, 32>}, {transform_indices = @transform_3, window_bounds = array<i64: 16, 32>}]} {
    %c0 = arith.constant 0 : index
    %c0_0 = arith.constant 0 : index
    %0 = vector.load %arg2[%c0, %c0_0] : memref<16x32xf32, #tpu.memory_space<vmem>>, vector<16x32xf32>
    %c0_1 = arith.constant 0 : index
    %c0_2 = arith.constant 0 : index
    %1 = vector.load %arg3[%c0_1, %c0_2] : memref<32x32xf32, #tpu.memory_space<vmem>>, vector<32x32xf32>
    %c0_3 = arith.constant 0 : index
    %c0_4 = arith.constant 0 : index
    %2 = vector.load %arg4[%c0_3, %c0_4] : memref<1x32xf32, #tpu.memory_space<vmem>>, vector<1x32xf32>
    %cst = arith.constant dense<0.000000e+00> : vector<16x32xf32>
    %3 = tpu.matmul %0, %1, %cst {dimension_numbers = #tpu.dot_dimension_numbers<[1], [0], [0], [1], [0, 0, 1, 1], [], []>, precision = #tpu.contract_precision<fp32>} : vector<16x32xf32>, vector<32x32xf32>, vector<16x32xf32> -> vector<16x32xf32>
    %4 = vector.broadcast %2 : vector<1x32xf32> to vector<16x32xf32>
    %5 = arith.addf %3, %4 : vector<16x32xf32>
    %c0_5 = arith.constant 0 : index
    %c0_6 = arith.constant 0 : index
    %6 = vector.load %arg5[%c0_5, %c0_6] : memref<16x32xf32, #tpu.memory_space<vmem>>, vector<16x32xf32>
    tpu.vector_store %arg5[%c0_5, %c0_6], %5 {strides = array<i32>} : memref<16x32xf32, #tpu.memory_space<vmem>>, vector<16x32xf32>,
    return
  }
  func.func @transform_0(%arg0: i32, %arg1: i32) -> (i32, i32) {
    %c0_i32 = arith.constant 0 : i32
    %c0_i32_0 = arith.constant 0 : i32
    return %arg0, %c0_i32 : i32, i32
  }
  func.func @transform_1(%arg0: i32, %arg1: i32) -> (i32, i32) {
    %c0_i32 = arith.constant 0 : i32
    %c0_i32_0 = arith.constant 0 : i32
    return %c0_i32, %arg1 : i32, i32
  }
  func.func @transform_2(%arg0: i32, %arg1: i32) -> (i32, i32) {
    %c0_i32 = arith.constant 0 : i32
    %c0_i32_0 = arith.constant 0 : i32
    return %c0_i32, %arg1 : i32, i32
  }
  func.func @transform_3(%arg0: i32, %arg1: i32) -> (i32, i32) {
    %c0_i32 = arith.constant 0 : i32
    return %arg0, %arg1 : i32, i32
  }
}

</mosaic_0001>

<llo_original>
// kernel: tpu_custom_call.1
$region0: #{tpu_custom_call.1}
  #allocation0 [shape = 'u32[]', space=smem, size = 0x4, offset = 0x4, fixed_abs, tag = 'smem constant byte address 0x4 - core index']
  #allocation1 [shape = 'u32[144,128]{1,0:T(1,128)}', space=vmem, size = 0x12000, scoped, tag = 'internal scratch']
  %s0 = inlined_call_operand.hbm [shape: f32[16,32], index: 0, kind: input, shape index: {}]
  %s1 = inlined_call_operand.hbm [shape: f32[32,32], index: 1, kind: input, shape index: {}]
  %s2 = inlined_call_operand.vmem [shape: f32[1,32], index: 2, kind: input, shape index: {}]
  %s3 = inlined_call_operand.hbm [shape: f32[16,32], index: 3, kind: output, shape index: {}]
  %s4 = sld [smem:[#allocation0]]
  $region30: #{tpu_custom_call.1} parent=0
    _
  %s6 = ssub.s32 1, %s4
  %s7 = scalar_select 0, %s6, %s4
  $region1: #{tpu_custom_call.1} parent=0
    #allocation2 [shape = 'u8[8192]{0}', space=vmem, size = 0x2000, scoped, tag = 'input window, operand 0, single buffered']
    #allocation3 [shape = 's32[1]{0}', space=sflag, size = 0x4, scoped, tag = 'scoped memory for tpu_custom_call.1']
    #allocation4 [shape = 's32[1]{0}', space=sflag, size = 0x4, scoped, tag = 'scoped memory for tpu_custom_call.1']
    #allocation5 [shape = 'u8[16384]{0}', space=vmem, size = 0x4000, scoped, tag = 'input window, operand 1, single buffered']
    #allocation6 [shape = 's32[1]{0}', space=sflag, size = 0x4, scoped, tag = 'scoped memory for tpu_custom_call.1']
    #allocation7 [shape = 'u8[8192]{0}', space=vmem, size = 0x2000, scoped, tag = 'output window, operand 0, single buffered']
    %8 = vsyncpa [#allocation3], 0
    %9 = vsyncpa [#allocation6], 0
    %10 = vsyncpa [#allocation4], 0
    // Predicated region
    $region2: #{tpu_custom_call.1} parent=1 // pred_check
      _
    $region3: #{tpu_custom_call.1} parent=1 // pred_check_branch
      %12 = sbr.rel (0) target = $region5
    $region4: #{tpu_custom_call.1} parent=1 // pred_region
      %s14 = ssub.s32 256, 256
      %15 = vsyncadd [#allocation3], %s14
      %s16 = sshll.u32 [#allocation2], 4
      %s17 = int_to_ptr.vmem [resolvable:$true] %s16
      %22 = dma.hbm_to_vmem [thread:$0]  %s0, 256, %s17, [#allocation3], 128, 128, 8
    $region5: #{tpu_custom_call.1} parent=1 // pred_fallthru
      _
    // Predicated region
    $region6: #{tpu_custom_call.1} parent=1 // pred_check
      _
    $region7: #{tpu_custom_call.1} parent=1 // pred_check_branch
      %24 = sbr.rel (0) target = $region9
    $region8: #{tpu_custom_call.1} parent=1 // pred_region
      %s26 = ssub.s32 512, 512
      %27 = vsyncadd [#allocation6], %s26
      %s28 = sshll.u32 [#allocation5], 4
      %s29 = int_to_ptr.vmem [resolvable:$true] %s28
      %34 = dma.hbm_to_vmem [thread:$0]  %s1, 512, %s29, [#allocation6], 128, 128, 8
    $region9: #{tpu_custom_call.1} parent=1 // pred_fallthru
      _
    // Predicated region
    $region10: #{tpu_custom_call.1} parent=1 // pred_check
      _
    $region11: #{tpu_custom_call.1} parent=1 // pred_check_branch
      %36 = sbr.rel (0) target = $region13
    $region12: #{tpu_custom_call.1} parent=1 // pred_region
      _
    $region13: #{tpu_custom_call.1} parent=1 // pred_fallthru
      _
    // Predicated region
    $region14: #{tpu_custom_call.1} parent=1 // pred_check
      _
    $region15: #{tpu_custom_call.1} parent=1 // pred_check_branch
      %38 = sbr.rel (0) target = $region17
    $region16: #{tpu_custom_call.1} parent=1 // pred_region
      %39 = dma.done [#allocation3], 256
    $region17: #{tpu_custom_call.1} parent=1 // pred_fallthru
      _
    // Predicated region
    $region18: #{tpu_custom_call.1} parent=1 // pred_check
      _
    $region19: #{tpu_custom_call.1} parent=1 // pred_check_branch
      %41 = sbr.rel (0) target = $region21
    $region20: #{tpu_custom_call.1} parent=1 // pred_region
      %42 = dma.done [#allocation6], 512
    $region21: #{tpu_custom_call.1} parent=1 // pred_fallthru
      _
    %v43 = vld [vmem:[#allocation2] sm:$0xff]
    %v44 = vld [vmem:[#allocation2 + $0x8] sm:$0xff]
    %v45 = vld [vmem:[#allocation5] sm:$0xff]
    %v46 = vld [vmem:[#allocation5 + $0x8] sm:$0xff]
    %v47 = vld [vmem:[#allocation5 + $0x10] sm:$0xff]
    %v48 = vld [vmem:[#allocation5 + $0x18] sm:$0xff]
    %v49 = vld [vmem:[%s2] sm:$0x1]
    %v51 = vlaneseq
    %v52 = vshrl.u32 %v51, 7
    %v53 = vsub.s32 0, %v52
    %v54 = vrot.slane %v49, %v53
    %vm56 = vcmask 261120
    %v58 = vsel %vm56, %v43, 0
    %v61 = vsel %vm56, %v44, 0
    %63 = vmatprep.subr.mxu0 0.0
    %64 = vmatpush1.msra.mxu0 0.0
    %65 = vmatprep.subr.mxu0 0.0
    %66 = vmatpush1.msra.mxu0 0.0
    %67 = vmatprep.subr.mxu0 0.0
    %68 = vmatpush1.msra.mxu0 0.0
    %69 = vmatprep.subr.mxu0 0.0
    %70 = vmatpush1.msra.mxu0 0.0
    %71 = vmatprep.subr.mxu0 0.0
    %72 = vmatpush1.msra.mxu0 0.0
    %73 = vmatprep.subr.mxu0 0.0
    %74 = vmatpush1.msra.mxu0 0.0
    %75 = vmatprep.subr.mxu0 0.0
    %76 = vmatpush1.msra.mxu0 0.0
    %77 = vmatprep.subr.mxu0 0.0
    %78 = vmatpush1.msra.mxu0 0.0
    %79 = vmatprep.subr.mxu0 0.0
    %80 = vmatpush1.msra.mxu0 0.0
    %81 = vmatprep.subr.mxu0 0.0
    %82 = vmatpush1.msra.mxu0 0.0
    %83 = vmatprep.subr.mxu0 0.0
    %84 = vmatpush1.msra.mxu0 0.0
    %85 = vmatprep.subr.mxu0 0.0
    %86 = vmatpush1.msra.mxu0 0.0
    %87 = vmatprep.subr.mxu0 0.0
    %v88 = vand.u32 %v48, 4294901760
    %89 = vmatpush1.msra.mxu0 %v88
    %90 = vmatprep.subr.mxu0 0.0
    %v91 = vand.u32 %v47, 4294901760
    %92 = vmatpush1.msra.mxu0 %v91
    %93 = vmatprep.subr.mxu0 0.0
    %v94 = vand.u32 %v46, 4294901760
    %95 = vmatpush1.msra.mxu0 %v94
    %96 = vmatprep.subr.mxu0 0.0
    %v97 = vand.u32 %v45, 4294901760
    %98 = vmatpush1.msra.mxu0 %v97
    %99 = vmatprep.subr.mxu0 0.0
    %100 = vmatpush2.msra.mxu0 0.0
    %101 = vmatprep.subr.mxu0 0.0
    %102 = vmatpush2.msra.mxu0 0.0
    %103 = vmatprep.subr.mxu0 0.0
    %104 = vmatpush2.msra.mxu0 0.0
    %105 = vmatprep.subr.mxu0 0.0
    %106 = vmatpush2.msra.mxu0 0.0
    %107 = vmatprep.subr.mxu0 0.0
    %108 = vmatpush2.msra.mxu0 0.0
    %109 = vmatprep.subr.mxu0 0.0
    %110 = vmatpush2.msra.mxu0 0.0
    %111 = vmatprep.subr.mxu0 0.0
    %112 = vmatpush2.msra.mxu0 0.0
    %113 = vmatprep.subr.mxu0 0.0
    %114 = vmatpush2.msra.mxu0 0.0
    %115 = vmatprep.subr.mxu0 0.0
    %116 = vmatpush2.msra.mxu0 0.0
    %117 = vmatprep.subr.mxu0 0.0
    %118 = vmatpush2.msra.mxu0 0.0
    %119 = vmatprep.subr.mxu0 0.0
    %120 = vmatpush2.msra.mxu0 0.0
    %121 = vmatprep.subr.mxu0 0.0
    %122 = vmatpush2.msra.mxu0 0.0
    %123 = vmatprep.subr.mxu0 0.0
    %124 = vmatpush2.msra.mxu0 0.0
    %125 = vmatprep.subr.mxu0 0.0
    %126 = vmatpush2.msra.mxu0 0.0
    %127 = vmatprep.subr.mxu0 0.0
    %128 = vmatpush2.msra.mxu0 0.0
    %129 = vmatprep.subr.mxu0 0.0
    %130 = vmatpush2.msra.mxu0 0.0
    %131 = vmatprep.mubr.f32.mxu0 0.0
    %v132 = vand.u32 %v58, 4294901760
    %v133 = vsub.f32 %v58, %v132
    %v134 = vand.u32 %v133, 4294901760
    %v135 = vsub.f32 %v133, %v134
    %v136 = vand.u32 %v135, 4294901760
    %137 = vmatmul.mubr.f32.gmra.mxu0 %v136
    %v138 = vpop.f32.mrf.mxu0
    %v139 = vadd.f32 %v54, %v138
    %v140 = vpop.f32.mrf.mxu0
    %141 = vmatprep.mubr.f32.mxu0 0.0
    %v142 = vand.u32 %v61, 4294901760
    %v143 = vsub.f32 %v61, %v142
    %v144 = vand.u32 %v143, 4294901760
    %v145 = vsub.f32 %v143, %v144
    %v146 = vand.u32 %v145, 4294901760
    %147 = vmatmul.mubr.f32.gmra.mxu0 %v146
    %v148 = vpop.f32.mrf.mxu0
    %v149 = vadd.f32 %v54, %v148
    %v150 = vpop.f32.mrf.mxu0
    %151 = vdwg.mxu0
    %152 = vmatprep.subr.mxu0 0.0
    %153 = vmatpush1.msra.mxu0 0.0
    %154 = vmatprep.subr.mxu0 0.0
    %155 = vmatpush1.msra.mxu0 0.0
    %156 = vmatprep.subr.mxu0 0.0
    %157 = vmatpush1.msra.mxu0 0.0
    %158 = vmatprep.subr.mxu0 0.0
    %159 = vmatpush1.msra.mxu0 0.0
    %160 = vmatprep.subr.mxu0 0.0
    %161 = vmatpush1.msra.mxu0 0.0
    %162 = vmatprep.subr.mxu0 0.0
    %163 = vmatpush1.msra.mxu0 0.0
    %164 = vmatprep.subr.mxu0 0.0
    %165 = vmatpush1.msra.mxu0 0.0
    %166 = vmatprep.subr.mxu0 0.0
    %167 = vmatpush1.msra.mxu0 0.0
    %168 = vmatprep.subr.mxu0 0.0
    %169 = vmatpush1.msra.mxu0 0.0
    %170 = vmatprep.subr.mxu0 0.0
    %171 = vmatpush1.msra.mxu0 0.0
    %172 = vmatprep.subr.mxu0 0.0
    %173 = vmatpush1.msra.mxu0 0.0
    %174 = vmatprep.subr.mxu0 0.0
    %175 = vmatpush1.msra.mxu0 0.0
    %176 = vmatprep.subr.mxu0 0.0
    %v177 = vand.u32 %v48, 4294901760
    %v178 = vsub.f32 %v48, %v177
    %v179 = vand.u32 %v178, 4294901760
    %v180 = vsub.f32 %v178, %v179
    %v181 = vand.u32 %v180, 4294901760
    %182 = vmatpush1.msra.mxu0 %v181
    %183 = vmatprep.subr.mxu0 0.0
    %v184 = vand.u32 %v47, 4294901760
    %v185 = vsub.f32 %v47, %v184
    %v186 = vand.u32 %v185, 4294901760
    %v187 = vsub.f32 %v185, %v186
    %v188 = vand.u32 %v187, 4294901760
    %189 = vmatpush1.msra.mxu0 %v188
    %190 = vmatprep.subr.mxu0 0.0
    %v191 = vand.u32 %v46, 4294901760
    %v192 = vsub.f32 %v46, %v191
    %v193 = vand.u32 %v192, 4294901760
    %v194 = vsub.f32 %v192, %v193
    %v195 = vand.u32 %v194, 4294901760
    %196 = vmatpush1.msra.mxu0 %v195
    %197 = vmatprep.subr.mxu0 0.0
    %v198 = vand.u32 %v45, 4294901760
    %v199 = vsub.f32 %v45, %v198
    %v200 = vand.u32 %v199, 4294901760
    %v201 = vsub.f32 %v199, %v200
    %v202 = vand.u32 %v201, 4294901760
    %203 = vmatpush1.msra.mxu0 %v202
    %204 = vmatprep.subr.mxu0 0.0
    %205 = vmatpush2.msra.mxu0 0.0
    %206 = vmatprep.subr.mxu0 0.0
    %207 = vmatpush2.msra.mxu0 0.0
    %208 = vmatprep.subr.mxu0 0.0
    %209 = vmatpush2.msra.mxu0 0.0
    %210 = vmatprep.subr.mxu0 0.0
    %211 = vmatpush2.msra.mxu0 0.0
    %212 = vmatprep.subr.mxu0 0.0
    %213 = vmatpush2.msra.mxu0 0.0
    %214 = vmatprep.subr.mxu0 0.0
    %215 = vmatpush2.msra.mxu0 0.0
    %216 = vmatprep.subr.mxu0 0.0
    %217 = vmatpush2.msra.mxu0 0.0
    %218 = vmatprep.subr.mxu0 0.0
    %219 = vmatpush2.msra.mxu0 0.0
    %220 = vmatprep.subr.mxu0 0.0
    %221 = vmatpush2.msra.mxu0 0.0
    %222 = vmatprep.subr.mxu0 0.0
    %223 = vmatpush2.msra.mxu0 0.0
    %224 = vmatprep.subr.mxu0 0.0
    %225 = vmatpush2.msra.mxu0 0.0
    %226 = vmatprep.subr.mxu0 0.0
    %227 = vmatpush2.msra.mxu0 0.0
    %228 = vmatprep.subr.mxu0 0.0
    %229 = vmatpush2.msra.mxu0 0.0
    %230 = vmatprep.subr.mxu0 0.0
    %231 = vmatpush2.msra.mxu0 0.0
    %232 = vmatprep.subr.mxu0 0.0
    %233 = vmatpush2.msra.mxu0 0.0
    %234 = vmatprep.subr.mxu0 0.0
    %235 = vmatpush2.msra.mxu0 0.0
    %236 = vmatprep.mubr.f32.mxu0 0.0
    %v237 = vand.u32 %v58, 4294901760
    %238 = vmatmul.mubr.f32.gmra.mxu0 %v237
    %v239 = vpop.f32.mrf.mxu0
    %v240 = vadd.f32 %v139, %v239
    %v241 = vpop.f32.mrf.mxu0
    %242 = vmatprep.mubr.f32.mxu0 0.0
    %v243 = vand.u32 %v61, 4294901760
    %244 = vmatmul.mubr.f32.gmra.mxu0 %v243
    %v245 = vpop.f32.mrf.mxu0
    %v246 = vadd.f32 %v149, %v245
    %v247 = vpop.f32.mrf.mxu0
    %248 = vdwg.mxu0
    %249 = vmatprep.subr.mxu0 0.0
    %250 = vmatpush1.msra.mxu0 0.0
    %251 = vmatprep.subr.mxu0 0.0
    %252 = vmatpush1.msra.mxu0 0.0
    %253 = vmatprep.subr.mxu0 0.0
    %254 = vmatpush1.msra.mxu0 0.0
    %255 = vmatprep.subr.mxu0 0.0
    %256 = vmatpush1.msra.mxu0 0.0
    %257 = vmatprep.subr.mxu0 0.0
    %258 = vmatpush1.msra.mxu0 0.0
    %259 = vmatprep.subr.mxu0 0.0
    %260 = vmatpush1.msra.mxu0 0.0
    %261 = vmatprep.subr.mxu0 0.0
    %262 = vmatpush1.msra.mxu0 0.0
    %263 = vmatprep.subr.mxu0 0.0
    %264 = vmatpush1.msra.mxu0 0.0
    %265 = vmatprep.subr.mxu0 0.0
    %266 = vmatpush1.msra.mxu0 0.0
    %267 = vmatprep.subr.mxu0 0.0
    %268 = vmatpush1.msra.mxu0 0.0
    %269 = vmatprep.subr.mxu0 0.0
    %270 = vmatpush1.msra.mxu0 0.0
    %271 = vmatprep.subr.mxu0 0.0
    %272 = vmatpush1.msra.mxu0 0.0
    %273 = vmatprep.subr.mxu0 0.0
    %v274 = vand.u32 %v48, 4294901760
    %v275 = vsub.f32 %v48, %v274
    %276 = vmatpush1.msra.mxu0 %v275
    %277 = vmatprep.subr.mxu0 0.0
    %v278 = vand.u32 %v47, 4294901760
    %v279 = vsub.f32 %v47, %v278
    %280 = vmatpush1.msra.mxu0 %v279
    %281 = vmatprep.subr.mxu0 0.0
    %v282 = vand.u32 %v46, 4294901760
    %v283 = vsub.f32 %v46, %v282
    %284 = vmatpush1.msra.mxu0 %v283
    %285 = vmatprep.subr.mxu0 0.0
    %v286 = vand.u32 %v45, 4294901760
    %v287 = vsub.f32 %v45, %v286
    %288 = vmatpush1.msra.mxu0 %v287
    %289 = vmatprep.subr.mxu0 0.0
    %290 = vmatpush2.msra.mxu0 0.0
    %291 = vmatprep.subr.mxu0 0.0
    %292 = vmatpush2.msra.mxu0 0.0
    %293 = vmatprep.subr.mxu0 0.0
    %294 = vmatpush2.msra.mxu0 0.0
    %295 = vmatprep.subr.mxu0 0.0
    %296 = vmatpush2.msra.mxu0 0.0
    %297 = vmatprep.subr.mxu0 0.0
    %298 = vmatpush2.msra.mxu0 0.0
    %299 = vmatprep.subr.mxu0 0.0
    %300 = vmatpush2.msra.mxu0 0.0
    %301 = vmatprep.subr.mxu0 0.0
    %302 = vmatpush2.msra.mxu0 0.0
    %303 = vmatprep.subr.mxu0 0.0
    %304 = vmatpush2.msra.mxu0 0.0
    %305 = vmatprep.subr.mxu0 0.0
    %306 = vmatpush2.msra.mxu0 0.0
    %307 = vmatprep.subr.mxu0 0.0
    %308 = vmatpush2.msra.mxu0 0.0
    %309 = vmatprep.subr.mxu0 0.0
    %310 = vmatpush2.msra.mxu0 0.0
    %311 = vmatprep.subr.mxu0 0.0
    %312 = vmatpush2.msra.mxu0 0.0
    %313 = vmatprep.subr.mxu0 0.0
    %314 = vmatpush2.msra.mxu0 0.0
    %315 = vmatprep.subr.mxu0 0.0
    %316 = vmatpush2.msra.mxu0 0.0
    %317 = vmatprep.subr.mxu0 0.0
    %318 = vmatpush2.msra.mxu0 0.0
    %319 = vmatprep.subr.mxu0 0.0
    %320 = vmatpush2.msra.mxu0 0.0
    %321 = vmatprep.mubr.f32.mxu0 0.0
    %v322 = vand.u32 %v58, 4294901760
    %v323 = vsub.f32 %v58, %v322
    %324 = vmatmul.mubr.f32.gmra.mxu0 %v323
    %v325 = vpop.f32.mrf.mxu0
    %v326 = vadd.f32 %v240, %v325
    %v327 = vpop.f32.mrf.mxu0
    %328 = vmatprep.mubr.f32.mxu0 0.0
    %v329 = vand.u32 %v61, 4294901760
    %v330 = vsub.f32 %v61, %v329
    %331 = vmatmul.mubr.f32.gmra.mxu0 %v330
    %v332 = vpop.f32.mrf.mxu0
    %v333 = vadd.f32 %v246, %v332
    %v334 = vpop.f32.mrf.mxu0
    %335 = vdwg.mxu0
    %336 = vmatprep.subr.mxu0 0.0
    %337 = vmatpush1.msra.mxu0 0.0
    %338 = vmatprep.subr.mxu0 0.0
    %339 = vmatpush1.msra.mxu0 0.0
    %340 = vmatprep.subr.mxu0 0.0
    %341 = vmatpush1.msra.mxu0 0.0
    %342 = vmatprep.subr.mxu0 0.0
    %343 = vmatpush1.msra.mxu0 0.0
    %344 = vmatprep.subr.mxu0 0.0
    %345 = vmatpush1.msra.mxu0 0.0
    %346 = vmatprep.subr.mxu0 0.0
    %347 = vmatpush1.msra.mxu0 0.0
    %348 = vmatprep.subr.mxu0 0.0
    %349 = vmatpush1.msra.mxu0 0.0
    %350 = vmatprep.subr.mxu0 0.0
    %351 = vmatpush1.msra.mxu0 0.0
    %352 = vmatprep.subr.mxu0 0.0
    %353 = vmatpush1.msra.mxu0 0.0
    %354 = vmatprep.subr.mxu0 0.0
    %355 = vmatpush1.msra.mxu0 0.0
    %356 = vmatprep.subr.mxu0 0.0
    %357 = vmatpush1.msra.mxu0 0.0
    %358 = vmatprep.subr.mxu0 0.0
    %359 = vmatpush1.msra.mxu0 0.0
    %360 = vmatprep.subr.mxu0 0.0
    %v361 = vand.u32 %v48, 4294901760
    %362 = vmatpush1.msra.mxu0 %v361
    %363 = vmatprep.subr.mxu0 0.0
    %v364 = vand.u32 %v47, 4294901760
    %365 = vmatpush1.msra.mxu0 %v364
    %366 = vmatprep.subr.mxu0 0.0
    %v367 = vand.u32 %v46, 4294901760
    %368 = vmatpush1.msra.mxu0 %v367
    %369 = vmatprep.subr.mxu0 0.0
    %v370 = vand.u32 %v45, 4294901760
    %371 = vmatpush1.msra.mxu0 %v370
    %372 = vmatprep.subr.mxu0 0.0
    %373 = vmatpush2.msra.mxu0 0.0
    %374 = vmatprep.subr.mxu0 0.0
    %375 = vmatpush2.msra.mxu0 0.0
    %376 = vmatprep.subr.mxu0 0.0
    %377 = vmatpush2.msra.mxu0 0.0
    %378 = vmatprep.subr.mxu0 0.0
    %379 = vmatpush2.msra.mxu0 0.0
    %380 = vmatprep.subr.mxu0 0.0
    %381 = vmatpush2.msra.mxu0 0.0
    %382 = vmatprep.subr.mxu0 0.0
    %383 = vmatpush2.msra.mxu0 0.0
    %384 = vmatprep.subr.mxu0 0.0
    %385 = vmatpush2.msra.mxu0 0.0
    %386 = vmatprep.subr.mxu0 0.0
    %387 = vmatpush2.msra.mxu0 0.0
    %388 = vmatprep.subr.mxu0 0.0
    %389 = vmatpush2.msra.mxu0 0.0
    %390 = vmatprep.subr.mxu0 0.0
    %391 = vmatpush2.msra.mxu0 0.0
    %392 = vmatprep.subr.mxu0 0.0
    %393 = vmatpush2.msra.mxu0 0.0
    %394 = vmatprep.subr.mxu0 0.0
    %395 = vmatpush2.msra.mxu0 0.0
    %396 = vmatprep.subr.mxu0 0.0
    %397 = vmatpush2.msra.mxu0 0.0
    %398 = vmatprep.subr.mxu0 0.0
    %399 = vmatpush2.msra.mxu0 0.0
    %400 = vmatprep.subr.mxu0 0.0
    %401 = vmatpush2.msra.mxu0 0.0
    %402 = vmatprep.subr.mxu0 0.0
    %403 = vmatpush2.msra.mxu0 0.0
    %404 = vmatprep.mubr.f32.mxu0 0.0
    %v405 = vand.u32 %v58, 4294901760
    %v406 = vsub.f32 %v58, %v405
    %v407 = vand.u32 %v406, 4294901760
    %408 = vmatmul.mubr.f32.gmra.mxu0 %v407
    %v409 = vpop.f32.mrf.mxu0
    %v410 = vadd.f32 %v326, %v409
    %v411 = vpop.f32.mrf.mxu0
    %412 = vmatprep.mubr.f32.mxu0 0.0
    %v413 = vand.u32 %v61, 4294901760
    %v414 = vsub.f32 %v61, %v413
    %v415 = vand.u32 %v414, 4294901760
    %416 = vmatmul.mubr.f32.gmra.mxu0 %v415
    %v417 = vpop.f32.mrf.mxu0
    %v418 = vadd.f32 %v333, %v417
    %v419 = vpop.f32.mrf.mxu0
    %420 = vdwg.mxu0
    %421 = vmatprep.subr.mxu0 0.0
    %422 = vmatpush1.msra.mxu0 0.0
    %423 = vmatprep.subr.mxu0 0.0
    %424 = vmatpush1.msra.mxu0 0.0
    %425 = vmatprep.subr.mxu0 0.0
    %426 = vmatpush1.msra.mxu0 0.0
    %427 = vmatprep.subr.mxu0 0.0
    %428 = vmatpush1.msra.mxu0 0.0
    %429 = vmatprep.subr.mxu0 0.0
    %430 = vmatpush1.msra.mxu0 0.0
    %431 = vmatprep.subr.mxu0 0.0
    %432 = vmatpush1.msra.mxu0 0.0
    %433 = vmatprep.subr.mxu0 0.0
    %434 = vmatpush1.msra.mxu0 0.0
    %435 = vmatprep.subr.mxu0 0.0
    %436 = vmatpush1.msra.mxu0 0.0
    %437 = vmatprep.subr.mxu0 0.0
    %438 = vmatpush1.msra.mxu0 0.0
    %439 = vmatprep.subr.mxu0 0.0
    %440 = vmatpush1.msra.mxu0 0.0
    %441 = vmatprep.subr.mxu0 0.0
    %442 = vmatpush1.msra.mxu0 0.0
    %443 = vmatprep.subr.mxu0 0.0
    %444 = vmatpush1.msra.mxu0 0.0
    %445 = vmatprep.subr.mxu0 0.0
    %v446 = vand.u32 %v48, 4294901760
    %v447 = vsub.f32 %v48, %v446
    %v448 = vand.u32 %v447, 4294901760
    %449 = vmatpush1.msra.mxu0 %v448
    %450 = vmatprep.subr.mxu0 0.0
    %v451 = vand.u32 %v47, 4294901760
    %v452 = vsub.f32 %v47, %v451
    %v453 = vand.u32 %v452, 4294901760
    %454 = vmatpush1.msra.mxu0 %v453
    %455 = vmatprep.subr.mxu0 0.0
    %v456 = vand.u32 %v46, 4294901760
    %v457 = vsub.f32 %v46, %v456
    %v458 = vand.u32 %v457, 4294901760
    %459 = vmatpush1.msra.mxu0 %v458
    %460 = vmatprep.subr.mxu0 0.0
    %v461 = vand.u32 %v45, 4294901760
    %v462 = vsub.f32 %v45, %v461
    %v463 = vand.u32 %v462, 4294901760
    %464 = vmatpush1.msra.mxu0 %v463
    %465 = vmatprep.subr.mxu0 0.0
    %466 = vmatpush2.msra.mxu0 0.0
    %467 = vmatprep.subr.mxu0 0.0
    %468 = vmatpush2.msra.mxu0 0.0
    %469 = vmatprep.subr.mxu0 0.0
    %470 = vmatpush2.msra.mxu0 0.0
    %471 = vmatprep.subr.mxu0 0.0
    %472 = vmatpush2.msra.mxu0 0.0
    %473 = vmatprep.subr.mxu0 0.0
    %474 = vmatpush2.msra.mxu0 0.0
    %475 = vmatprep.subr.mxu0 0.0
    %476 = vmatpush2.msra.mxu0 0.0
    %477 = vmatprep.subr.mxu0 0.0
    %478 = vmatpush2.msra.mxu0 0.0
    %479 = vmatprep.subr.mxu0 0.0
    %480 = vmatpush2.msra.mxu0 0.0
    %481 = vmatprep.subr.mxu0 0.0
    %482 = vmatpush2.msra.mxu0 0.0
    %483 = vmatprep.subr.mxu0 0.0
    %484 = vmatpush2.msra.mxu0 0.0
    %485 = vmatprep.subr.mxu0 0.0
    %486 = vmatpush2.msra.mxu0 0.0
    %487 = vmatprep.subr.mxu0 0.0
    %488 = vmatpush2.msra.mxu0 0.0
    %489 = vmatprep.subr.mxu0 0.0
    %490 = vmatpush2.msra.mxu0 0.0
    %491 = vmatprep.subr.mxu0 0.0
    %492 = vmatpush2.msra.mxu0 0.0
    %493 = vmatprep.subr.mxu0 0.0
    %494 = vmatpush2.msra.mxu0 0.0
    %495 = vmatprep.subr.mxu0 0.0
    %496 = vmatpush2.msra.mxu0 0.0
    %497 = vmatprep.mubr.f32.mxu0 0.0
    %v498 = vand.u32 %v58, 4294901760
    %499 = vmatmul.mubr.f32.gmra.mxu0 %v498
    %v500 = vpop.f32.mrf.mxu0
    %v501 = vadd.f32 %v410, %v500
    %v502 = vpop.f32.mrf.mxu0
    %503 = vmatprep.mubr.f32.mxu0 0.0
    %v504 = vand.u32 %v61, 4294901760
    %505 = vmatmul.mubr.f32.gmra.mxu0 %v504
    %v506 = vpop.f32.mrf.mxu0
    %v507 = vadd.f32 %v418, %v506
    %v508 = vpop.f32.mrf.mxu0
    %509 = vdwg.mxu0
    %510 = vmatprep.subr.mxu0 0.0
    %511 = vmatpush1.msra.mxu0 0.0
    %512 = vmatprep.subr.mxu0 0.0
    %513 = vmatpush1.msra.mxu0 0.0
    %514 = vmatprep.subr.mxu0 0.0
    %515 = vmatpush1.msra.mxu0 0.0
    %516 = vmatprep.subr.mxu0 0.0
    %517 = vmatpush1.msra.mxu0 0.0
    %518 = vmatprep.subr.mxu0 0.0
    %519 = vmatpush1.msra.mxu0 0.0
    %520 = vmatprep.subr.mxu0 0.0
    %521 = vmatpush1.msra.mxu0 0.0
    %522 = vmatprep.subr.mxu0 0.0
    %523 = vmatpush1.msra.mxu0 0.0
    %524 = vmatprep.subr.mxu0 0.0
    %525 = vmatpush1.msra.mxu0 0.0
    %526 = vmatprep.subr.mxu0 0.0
    %527 = vmatpush1.msra.mxu0 0.0
    %528 = vmatprep.subr.mxu0 0.0
    %529 = vmatpush1.msra.mxu0 0.0
    %530 = vmatprep.subr.mxu0 0.0
    %531 = vmatpush1.msra.mxu0 0.0
    %532 = vmatprep.subr.mxu0 0.0
    %533 = vmatpush1.msra.mxu0 0.0
    %534 = vmatprep.subr.mxu0 0.0
    %v535 = vand.u32 %v48, 4294901760
    %536 = vmatpush1.msra.mxu0 %v535
    %537 = vmatprep.subr.mxu0 0.0
    %v538 = vand.u32 %v47, 4294901760
    %539 = vmatpush1.msra.mxu0 %v538
    %540 = vmatprep.subr.mxu0 0.0
    %v541 = vand.u32 %v46, 4294901760
    %542 = vmatpush1.msra.mxu0 %v541
    %543 = vmatprep.subr.mxu0 0.0
    %v544 = vand.u32 %v45, 4294901760
    %545 = vmatpush1.msra.mxu0 %v544
    %546 = vmatprep.subr.mxu0 0.0
    %547 = vmatpush2.msra.mxu0 0.0
    %548 = vmatprep.subr.mxu0 0.0
    %549 = vmatpush2.msra.mxu0 0.0
    %550 = vmatprep.subr.mxu0 0.0
    %551 = vmatpush2.msra.mxu0 0.0
    %552 = vmatprep.subr.mxu0 0.0
    %553 = vmatpush2.msra.mxu0 0.0
    %554 = vmatprep.subr.mxu0 0.0
    %555 = vmatpush2.msra.mxu0 0.0
    %556 = vmatprep.subr.mxu0 0.0
    %557 = vmatpush2.msra.mxu0 0.0
    %558 = vmatprep.subr.mxu0 0.0
    %559 = vmatpush2.msra.mxu0 0.0
    %560 = vmatprep.subr.mxu0 0.0
    %561 = vmatpush2.msra.mxu0 0.0
    %562 = vmatprep.subr.mxu0 0.0
    %563 = vmatpush2.msra.mxu0 0.0
    %564 = vmatprep.subr.mxu0 0.0
    %565 = vmatpush2.msra.mxu0 0.0
    %566 = vmatprep.subr.mxu0 0.0
    %567 = vmatpush2.msra.mxu0 0.0
    %568 = vmatprep.subr.mxu0 0.0
    %569 = vmatpush2.msra.mxu0 0.0
    %570 = vmatprep.subr.mxu0 0.0
    %571 = vmatpush2.msra.mxu0 0.0
    %572 = vmatprep.subr.mxu0 0.0
    %573 = vmatpush2.msra.mxu0 0.0
    %574 = vmatprep.subr.mxu0 0.0
    %575 = vmatpush2.msra.mxu0 0.0
    %576 = vmatprep.subr.mxu0 0.0
    %577 = vmatpush2.msra.mxu0 0.0
    %578 = vmatprep.mubr.f32.mxu0 0.0
    %v579 = vand.u32 %v58, 4294901760
    %580 = vmatmul.mubr.f32.gmra.mxu0 %v579
    %v581 = vpop.f32.mrf.mxu0
    %v582 = vadd.f32 %v501, %v581
    %v583 = vpop.f32.mrf.mxu0
    %584 = vmatprep.mubr.f32.mxu0 0.0
    %v585 = vand.u32 %v61, 4294901760
    %586 = vmatmul.mubr.f32.gmra.mxu0 %v585
    %v587 = vpop.f32.mrf.mxu0
    %v588 = vadd.f32 %v507, %v587
    %v589 = vpop.f32.mrf.mxu0
    %590 = vdwg.mxu0
    %591 = vst.msk [vmem:[#allocation7] sm:$0xff] %vm56, %v582
    %592 = vst.msk [vmem:[#allocation7 + $0x8] sm:$0xff] %vm56, %v588
    // Predicated region
    $region22: #{tpu_custom_call.1} parent=1 // pred_check
      _
    $region23: #{tpu_custom_call.1} parent=1 // pred_check_branch
      %594 = sbr.rel (0) target = $region25
    $region24: #{tpu_custom_call.1} parent=1 // pred_region
      %s596 = ssub.s32 256, 256
      %597 = vsyncadd [#allocation4], %s596
      %s598 = sshll.u32 [#allocation7], 4
      %s599 = int_to_ptr.vmem [resolvable:$true] %s598
      %604 = dma.vmem_to_hbm [thread:$0]  %s599, 256, %s3, [#allocation4], 128, 128, 8
    $region25: #{tpu_custom_call.1} parent=1 // pred_fallthru
      _
    // Predicated region
    $region26: #{tpu_custom_call.1} parent=1 // pred_check
      _
    $region27: #{tpu_custom_call.1} parent=1 // pred_check_branch
      %606 = sbr.rel (0) target = $region29
    $region28: #{tpu_custom_call.1} parent=1 // pred_region
      %607 = dma.done [#allocation4], 256
    $region29: #{tpu_custom_call.1} parent=1 // pred_fallthru
      _
    %608 = vsyncpa [#allocation3], 1
    %609 = vsyncpa [#allocation6], 1
    %610 = vsyncpa [#allocation4], 1

</llo_original>
